<compile_context>
chip_gen: v7x
topology: tpu7x:2x2x1
jax: 0.10.0
libtpu: 0.0.40
codegen_flags: <defaults>
</compile_context>

<pallas_src>
import functools

import jax
import jax.numpy as jnp
from jax.experimental import pallas as pl
from jax.experimental.pallas import tpu as pltpu


def _round_up(x: int, m: int) -> int:
    return (x + m - 1) // m * m


def _vmem_capacity_bytes() -> int:
    """Generation-aware VMEM capacity; conservative fallback (v7x per-TC)."""
    try:
        return int(pltpu.get_tpu_info().vmem_capacity_bytes)
    except Exception:
        return 64 * 1024 * 1024


def _choose_row_tile(n_rows: int, n_cols: int, itemsize: int, vmem_cap: int) -> int:
    """Rows (meshes) per grid step: multiple of 8, sized by a VMEM byte budget."""
    if n_rows <= 8:
        return n_rows  # block dim == full array dim is always legal
    # ~2-4 MiB per input block depending on generation; leaves headroom for the
    # f32 temporaries + double buffering well inside the scoped VMEM limit.
    per_buffer = max(1 << 20, min(4 << 20, vmem_cap // 32))
    tm = per_buffer // max(1, n_cols * itemsize)
    tm = max(8, (tm // 8) * 8)
    # Keep >= 2 grid steps so the "parallel" axis can shard across TensorCores
    # (v7x megacore) and the DMA pipeline has something to overlap.
    half = max(8, _round_up(pl.cdiv(n_rows, 2), 8))
    tm = min(tm, half)
    tm = min(tm, _round_up(n_rows, 8))
    return tm


def _ring_stencil_kernel(x_ref, out_ref, *, n_valid, tm, fold8):
    """One row tile of meshes.

    x_ref:  (tm, C) block, C = nV*3, natural (mesh, vertex*coord) layout.
    out_ref:(1, R, C) f32 lane-dense partial sums (R = 8 or 1).
    """
    x = x_ref[...]
    if x.dtype != jnp.float32:
        x = x.astype(jnp.float32)            # stream narrow, compute in f32
    n_cols = x.shape[-1]

    # Ring stencil: each vertex occupies 3 consecutive lanes, so the +/-1
    # vertex neighbors are lane rolls by +/-3 (wrap-around == ring closure).
    nxt = jnp.roll(x, shift=-3, axis=1)      # vertex v+1 (same coordinate)
    prv = jnp.roll(x, shift=3, axis=1)       # vertex v-1
    lv = x - 0.5 * (nxt + prv)
    lv2 = lv * lv                            # (tm, C)

    if n_valid % tm != 0:
        # Tail block: rows past n_valid hold undefined data -> zero them out.
        i = pl.program_id(0)
        row = i * tm + jax.lax.broadcasted_iota(jnp.int32, lv2.shape, 0)
        lv2 = jnp.where(row < n_valid, lv2, 0.0)

    if fold8:
        # Pure vreg-wise adds: fold groups of 8 sublanes onto an (8, C) slab.
        partial = lv2.reshape(tm // 8, 8, n_cols).sum(axis=0)
        out_ref[...] = partial.reshape(1, 8, n_cols)
    else:
        out_ref[...] = jnp.sum(lv2, axis=0, keepdims=True).reshape(1, 1, n_cols)


def _mesh_reg_loss_ref(verts: jnp.ndarray) -> jnp.ndarray:
    """Plain-JAX ring-Laplacian loss (reference + tiny-input fast path)."""
    v = verts.astype(jnp.float32)
    lv = v - 0.5 * (jnp.roll(v, 1, axis=1) + jnp.roll(v, -1, axis=1))
    return jnp.mean(jnp.sum(lv * lv, axis=-1))


def mesh_reg_loss(verts: jnp.ndarray, *, force_pallas: bool = False) -> jnp.ndarray:
    """Ring-Laplacian mesh regularization loss over (N, nV, 3) vertices."""
    N, nV, _ = verts.shape

    # Tiny inputs: fixed pallas_call + per-step overhead dominates; a fused XLA
    # elementwise+reduce is faster.
    if (not force_pallas) and verts.size * verts.dtype.itemsize < 256 * 1024:
        return _mesh_reg_loss_ref(verts)

    C = nV * 3
    x = verts.reshape(N, C)                  # free reshape, natural layout
    itemsize = x.dtype.itemsize

    vmem_cap = _vmem_capacity_bytes()
    tm = _choose_row_tile(N, C, itemsize, vmem_cap)
    grid = pl.cdiv(N, tm)
    fold8 = (tm % 8 == 0)
    R = 8 if fold8 else 1

    # Explicit VMEM budget: double-buffered input + f32 temporaries + output.
    in_block_bytes = tm * C * itemsize
    f32_block_bytes = tm * C * 4
    vmem_need = 2 * in_block_bytes + 6 * f32_block_bytes + (2 << 20)
    vmem_limit = int(min(max(vmem_need, 32 << 20), (3 * vmem_cap) // 4))

    kernel = functools.partial(_ring_stencil_kernel, n_valid=N, tm=tm, fold8=fold8)

    partials = pl.pallas_call(
        kernel,
        out_shape=jax.ShapeDtypeStruct((grid, R, C), jnp.float32),
        grid_spec=pltpu.PrefetchScalarGridSpec(
            num_scalar_prefetch=0,
            grid=(grid,),
            in_specs=[pl.BlockSpec((tm, C), lambda i: (i, 0))],
            out_specs=pl.BlockSpec((1, R, C), lambda i: (i, 0, 0)),
        ),
        compiler_params=pltpu.CompilerParams(
            dimension_semantics=("parallel",),
            vmem_limit_bytes=vmem_limit,
        ),
    )(x)

    # Tiny final reduction + normalization by the TRUE element count.
    return jnp.sum(partials) / jnp.float32(N * nV)


def indep_seq_mesh_reg_loss(new_V, *, force_pallas: bool = False):
    """Forward of IndepSeqMeshRegLoss.

    Returns a (1,)-shaped float32 array in both branches (matches the
    torch.zeros(1) None-branch and keeps shapes consistent for jit/cond).
    """
    if new_V is None:
        return jnp.zeros((1,), dtype=jnp.float32)
    B, nI, nV, _ = new_V.shape
    out = new_V.reshape(B * nI, nV, 3)
    return jnp.reshape(mesh_reg_loss(out, force_pallas=force_pallas), (1,))


def build_ring_laplacian(nV: int) -> jnp.ndarray:
    """Dense ring-mesh Laplacian (reference only)."""
    eye = jnp.eye(nV, dtype=jnp.float32)
    up = jnp.roll(eye, shift=1, axis=1)
    down = jnp.roll(eye, shift=-1, axis=1)
    return eye - 0.5 * (up + down)


def _dense_reference(new_V: jnp.ndarray) -> jnp.ndarray:
    B, nI, nV, _ = new_V.shape
    lap = build_ring_laplacian(nV)
    v = new_V.reshape(B * nI, nV, 3).astype(jnp.float32)
    ref_lv = jnp.einsum("ij,njd->nid", lap, v)
    return jnp.mean(jnp.sum(ref_lv * ref_lv, axis=-1))


if __name__ == "__main__":
    key = jax.random.PRNGKey(0)

    # --- Test 1: divisible case (N = 8 meshes, nV = 64). Force the Pallas path.
    B, nI, nV = 2, 4, 64
    k1, k2 = jax.random.split(key)
    new_V = jax.random.normal(k1, (B, nI, nV, 3), dtype=jnp.float32)

    loss = indep_seq_mesh_reg_loss(new_V, force_pallas=True)
    jax.block_until_ready(loss)
    assert loss.shape == (1,)
    ref = _dense_reference(new_V)
    assert jnp.allclose(loss[0], ref, rtol=1e-5, atol=1e-5), (loss, ref)

    # --- Test 2: non-divisible mesh count (N = 15) exercises the in-kernel
    #     row mask; nV = 48 exercises a non-128-multiple lane width.
    B2, nI2, nV2 = 3, 5, 48
    new_V2 = jax.random.normal(k2, (B2, nI2, nV2, 3), dtype=jnp.float32)
    loss2 = indep_seq_mesh_reg_loss(new_V2, force_pallas=True)
    jax.block_until_ready(loss2)
    ref2 = _dense_reference(new_V2)
    assert jnp.allclose(loss2[0], ref2, rtol=1e-5, atol=1e-5), (loss2, ref2)

    # --- Test 3: None-input path (matches `return torch.zeros(1)`).
    z = indep_seq_mesh_reg_loss(None)
    jax.block_until_ready(z)
    assert z.shape == (1,) and float(z[0]) == 0.0

    print("KERNEL_OK")
</pallas_src>

<mosaic_0001>
module attributes {stable_mosaic.version = 11 : i64} {
  func.func @_ring_stencil_kernel(%arg0: i32, %arg1: memref<8x192xf32, #tpu.memory_space<vmem>>, %arg2: memref<1x8x192xf32, #tpu.memory_space<vmem>>) attributes {dimension_semantics = [#tpu.dimension_semantics<parallel>], iteration_bounds = array<i64: 1>, scalar_prefetch = 0 : i64, scratch_operands = 0 : i64, tpu.core_type = #tpu.core_type<tc>, window_params = [{transform_indices = @transform_0, window_bounds = array<i64: 8, 192>}, {transform_indices = @transform_1, window_bounds = array<i64: 1, 8, 192>}]} {
    %c0 = arith.constant 0 : index
    %c0_0 = arith.constant 0 : index
    %0 = vector.load %arg1[%c0, %c0_0] : memref<8x192xf32, #tpu.memory_space<vmem>>, vector<8x192xf32>
    %1 = vector.extract_strided_slice %0 {offsets = [0, 3], sizes = [8, 189], strides = [1, 1]} : vector<8x192xf32> to vector<8x189xf32>
    %2 = vector.extract_strided_slice %0 {offsets = [0, 0], sizes = [8, 3], strides = [1, 1]} : vector<8x192xf32> to vector<8x3xf32>
    %3 = tpu.concatenate %1, %2 in 1 : vector<8x189xf32>, vector<8x3xf32> -> vector<8x192xf32>
    %4 = vector.extract_strided_slice %0 {offsets = [0, 189], sizes = [8, 3], strides = [1, 1]} : vector<8x192xf32> to vector<8x3xf32>
    %5 = vector.extract_strided_slice %0 {offsets = [0, 0], sizes = [8, 189], strides = [1, 1]} : vector<8x192xf32> to vector<8x189xf32>
    %6 = tpu.concatenate %4, %5 in 1 : vector<8x3xf32>, vector<8x189xf32> -> vector<8x192xf32>
    %7 = arith.addf %3, %6 : vector<8x192xf32>
    %cst = arith.constant 5.000000e-01 : f32
    %8 = vector.broadcast %cst : f32 to vector<8x192xf32>
    %9 = arith.mulf %8, %7 : vector<8x192xf32>
    %10 = arith.subf %0, %9 : vector<8x192xf32>
    %11 = arith.mulf %10, %10 : vector<8x192xf32>
    %12 = vector.shape_cast %11 : vector<8x192xf32> to vector<1x8x192xf32>
    %cst_1 = arith.constant dense<0.000000e+00> : vector<8x192xf32>
    %13 = vector.multi_reduction <add>, %12, %cst_1 [0] : vector<1x8x192xf32> to vector<8x192xf32>
    %14 = vector.shape_cast %13 : vector<8x192xf32> to vector<1x8x192xf32>
    %c0_2 = arith.constant 0 : index
    %c0_3 = arith.constant 0 : index
    %c0_4 = arith.constant 0 : index
    %15 = vector.load %arg2[%c0_2, %c0_3, %c0_4] : memref<1x8x192xf32, #tpu.memory_space<vmem>>, vector<1x8x192xf32>
    tpu.vector_store %arg2[%c0_2, %c0_3, %c0_4], %14 {strides = array<i32>} : memref<1x8x192xf32, #tpu.memory_space<vmem>>, vector<1x8x192xf32>,
    return
  }
  func.func @transform_0(%arg0: i32) -> (i32, i32) {
    %c0_i32 = arith.constant 0 : i32
    %c0_i32_0 = arith.constant 0 : i32
    return %arg0, %c0_i32 : i32, i32
  }
  func.func @transform_1(%arg0: i32) -> (i32, i32, i32) {
    %c0_i32 = arith.constant 0 : i32
    %c0_i32_0 = arith.constant 0 : i32
    %c0_i32_1 = arith.constant 0 : i32
    return %arg0, %c0_i32, %c0_i32_0 : i32, i32, i32
  }
}

</mosaic_0001>

<llo_original>
// kernel: tpu_custom_call.1
$region0: #{tpu_custom_call.1}
  #allocation0 [shape = 'u32[]', space=smem, size = 0x4, offset = 0x4, fixed_abs, tag = 'smem constant byte address 0x4 - core index']
  #allocation1 [shape = 'u32[144,128]{1,0:T(1,128)}', space=vmem, size = 0x12000, scoped, tag = 'internal scratch']
  %s0 = inlined_call_operand.hbm [shape: f32[8,192], index: 0, kind: input, shape index: {}]
  %s1 = inlined_call_operand.hbm [shape: f32[1,8,192], index: 1, kind: output, shape index: {}]
  %s2 = sld [smem:[#allocation0]]
  $region18: #{tpu_custom_call.1} parent=0
    _
  %s4 = ssub.s32 1, %s2
  %s5 = scalar_select 0, %s4, %s2
  $region1: #{tpu_custom_call.1} parent=0
    #allocation2 [shape = 'u8[8192]{0}', space=vmem, size = 0x2000, scoped, tag = 'input window, operand 0, single buffered']
    #allocation3 [shape = 's32[1]{0}', space=sflag, size = 0x4, scoped, tag = 'scoped memory for tpu_custom_call.1']
    #allocation4 [shape = 's32[1]{0}', space=sflag, size = 0x4, scoped, tag = 'scoped memory for tpu_custom_call.1']
    #allocation5 [shape = 'u8[8192]{0}', space=vmem, size = 0x2000, scoped, tag = 'output window, operand 0, single buffered']
    %6 = vsyncpa [#allocation3], 0
    %7 = vsyncpa [#allocation4], 0
    // Predicated region
    $region2: #{tpu_custom_call.1} parent=1 // pred_check
      _
    $region3: #{tpu_custom_call.1} parent=1 // pred_check_branch
      %9 = sbr.rel (0) target = $region5
    $region4: #{tpu_custom_call.1} parent=1 // pred_region
      %s11 = ssub.s32 256, 256
      %12 = vsyncadd [#allocation3], %s11
      %s14 = sshll.u32 [#allocation2], 4
      %s15 = int_to_ptr.vmem [resolvable:$true] %s14
      %17 = dma.hbm_to_vmem [thread:$0]  %s0, 256, %s15, [#allocation3]
    $region5: #{tpu_custom_call.1} parent=1 // pred_fallthru
      _
    // Predicated region
    $region6: #{tpu_custom_call.1} parent=1 // pred_check
      _
    $region7: #{tpu_custom_call.1} parent=1 // pred_check_branch
      %19 = sbr.rel (0) target = $region9
    $region8: #{tpu_custom_call.1} parent=1 // pred_region
      %20 = dma.done [#allocation3], 256
    $region9: #{tpu_custom_call.1} parent=1 // pred_fallthru
      _
    %v21 = vld [vmem:[#allocation2] sm:$0xff]
    %v22 = vld [vmem:[#allocation2 + $0x8] sm:$0xff]
    %25 = vrot.lane.b32.xlu0 %v21, 125
    %v26 = vpop.permute.xlu0 %25
    %27 = vrot.lane.b32.xlu0 %v22, 125
    %v28 = vpop.permute.xlu0 %27
    %vm29 = vcmask 1022976
    %v30 = vsel %vm29, %v26, %v28
    %33 = vrot.lane.b32.xlu0 %v21, 61
    %v34 = vpop.permute.xlu0 %33
    %vm36 = vcmask 498688
    %v37 = vsel %vm36, %v28, %v34
    %38 = vrot.lane.b32.xlu0 %v22, 67
    %v39 = vpop.permute.xlu0 %38
    %41 = vrot.lane.b32.xlu0 %v21, 3
    %v42 = vpop.permute.xlu0 %41
    %43 = vrot.lane.b32.xlu0 %v22, 3
    %v44 = vpop.permute.xlu0 %43
    %vm45 = vcmask 23552
    %v46 = vsel %vm45, %v42, %v44
    %v49 = vsel %vm45, %v39, %v42
    %v50 = vadd.f32 %v30, %v49
    %v51 = vadd.f32 %v37, %v46
    %v52 = vmul.f32 %v50, 0.5
    %v53 = vmul.f32 %v51, 0.5
    %v54 = vsub.f32 %v21, %v52
    %v55 = vsub.f32 %v22, %v53
    %v56 = vmul.f32 %v54, %v54
    %v57 = vmul.f32 %v55, %v55
    %v58 = vadd.f32 %v56, 0.0
    %v59 = vadd.f32 %v57, 0.0
    %60 = vst [vmem:[#allocation5] sm:$0xff] %v58
    %vm61 = vcmask 523264
    %62 = vst.msk [vmem:[#allocation5 + $0x8] sm:$0xff] %vm61, %v59
    // Predicated region
    $region10: #{tpu_custom_call.1} parent=1 // pred_check
      _
    $region11: #{tpu_custom_call.1} parent=1 // pred_check_branch
      %64 = sbr.rel (0) target = $region13
    $region12: #{tpu_custom_call.1} parent=1 // pred_region
      %s66 = ssub.s32 256, 256
      %67 = vsyncadd [#allocation4], %s66
      %s69 = sshll.u32 [#allocation5], 4
      %s70 = int_to_ptr.vmem [resolvable:$true] %s69
      %72 = dma.vmem_to_hbm [thread:$0]  %s70, 256, %s1, [#allocation4]
    $region13: #{tpu_custom_call.1} parent=1 // pred_fallthru
      _
    // Predicated region
    $region14: #{tpu_custom_call.1} parent=1 // pred_check
      _
    $region15: #{tpu_custom_call.1} parent=1 // pred_check_branch
      %74 = sbr.rel (0) target = $region17
    $region16: #{tpu_custom_call.1} parent=1 // pred_region
      %75 = dma.done [#allocation4], 256
    $region17: #{tpu_custom_call.1} parent=1 // pred_fallthru
      _
    %76 = vsyncpa [#allocation3], 1
    %77 = vsyncpa [#allocation4], 1

</llo_original>
